<compile_context>
chip_gen: v6e
topology: v6e:2x2x1
jax: 0.10.0
libtpu: 0.0.40
codegen_flags: <defaults>
</compile_context>

<pallas_src>
import jax
import jax.numpy as jnp
from jax.experimental import pallas as pl
from jax.experimental.pallas import tpu as pltpu

LANES = 128


def _round_up(n, m):
    return ((n + m - 1) // m) * m


def _news_kernel(x_ref, w1_ref, b1_ref, w2_ref, b2_ref, o_ref):
    # fc_1 (bn1 pre-folded into w1/b1): cast the f32 activation tile to bf16
    # in-kernel (no standalone wrapper cast), f32 MXU accumulation.
    x = x_ref[...].astype(jnp.bfloat16)
    h = jnp.dot(x, w1_ref[...], preferred_element_type=jnp.float32)
    h = jnp.maximum(h + b1_ref[...], jnp.float32(0.0))   # + bias, ReLU (f32 VPU)
    # dropout -> identity (eval mode)
    # fc_2 (bn2 pre-folded into w2/b2); output padded to 128 lanes.
    logits = jnp.dot(h.astype(w2_ref.dtype), w2_ref[...],
                     preferred_element_type=jnp.float32) + b2_ref[...]
    o_ref[...] = jax.nn.sigmoid(logits).astype(o_ref.dtype)   # sigmoid on EUP


def news_model_forward(x, params, n_classes, *, tm=None):
    """x: [B, bow_len] float32. params: BN-folded / lane-padded kernel params."""
    B, D = x.shape
    hid = params["w1"].shape[1]
    npad = params["w2"].shape[1]          # n_classes padded to a lane multiple

    # Batch tiling:
    #   - small/medium B: one grid step (tm = round_up(B, 8)); per-step
    #     overhead, not compute, is the wall clock here.
    #   - large B: 512-row tiles (~85% of HBM roofline in measured sweeps);
    #     multi-step grid then splits across the 2 TCs on v7x via "parallel".
    if tm is None:
        tm = _round_up(B, 8) if B <= 1024 else 512
    tm = min(_round_up(tm, 8), max(_round_up(B, 8), 8))
    num_tiles = pl.cdiv(B, tm)            # ragged last tile handled by Pallas

    cost = pl.CostEstimate(
        flops=2 * B * (D * hid + hid * npad),
        transcendentals=B * npad,                              # sigmoid
        bytes_accessed=(B * D * 4                              # x (f32 in HBM)
                        + D * hid * 2 + hid * 4                # w1, b1
                        + hid * npad * 2 + npad * 4            # w2, b2
                        + B * npad * 4),                       # out
    )

    out = pl.pallas_call(
        _news_kernel,
        out_shape=jax.ShapeDtypeStruct((B, npad), jnp.float32),
        grid_spec=pltpu.PrefetchScalarGridSpec(
            num_scalar_prefetch=0,
            grid=(num_tiles,),
            in_specs=[
                pl.BlockSpec((tm, D), lambda i: (i, 0)),       # x batch tile (f32)
                pl.BlockSpec((D, hid), lambda i: (0, 0)),      # w1 (VMEM-resident)
                pl.BlockSpec((1, hid), lambda i: (0, 0)),      # b1 (resident)
                pl.BlockSpec((hid, npad), lambda i: (0, 0)),   # w2 (resident)
                pl.BlockSpec((1, npad), lambda i: (0, 0)),     # b2 (resident)
            ],
            out_specs=pl.BlockSpec((tm, npad), lambda i: (i, 0)),
        ),
        compiler_params=pltpu.CompilerParams(
            dimension_semantics=("parallel",)),
        cost_estimate=cost,
    )(x, params["w1"], params["b1"], params["w2"], params["b2"])

    return out[:, :n_classes]


def init_params(key, bow_len, n_classes):
    """Synthetic PyTorch-shaped params; returns (kernel_params, f32_ref_params)."""
    hid = bow_len // 2
    ks = jax.random.split(key, 12)
    eps = 1e-5

    # BatchNorm1d(bow_len): gamma, beta, running_mean, running_var (eval mode)
    g1 = 1.0 + 0.1 * jax.random.normal(ks[0], (bow_len,), jnp.float32)
    be1 = 0.1 * jax.random.normal(ks[1], (bow_len,), jnp.float32)
    rm1 = 0.05 * jax.random.normal(ks[2], (bow_len,), jnp.float32)
    rv1 = jnp.abs(1.0 + 0.1 * jax.random.normal(ks[3], (bow_len,), jnp.float32))
    s1 = g1 / jnp.sqrt(rv1 + eps)
    t1 = be1 - rm1 * s1

    # Linear(bow_len -> hid), stored transposed [in, out]
    w1 = jax.random.normal(ks[4], (bow_len, hid), jnp.float32) / jnp.sqrt(bow_len)
    b1 = 0.01 * jax.random.normal(ks[5], (hid,), jnp.float32)

    # BatchNorm1d(hid)
    g2 = 1.0 + 0.1 * jax.random.normal(ks[6], (hid,), jnp.float32)
    be2 = 0.1 * jax.random.normal(ks[7], (hid,), jnp.float32)
    rm2 = 0.05 * jax.random.normal(ks[8], (hid,), jnp.float32)
    rv2 = jnp.abs(1.0 + 0.1 * jax.random.normal(ks[9], (hid,), jnp.float32))
    s2 = g2 / jnp.sqrt(rv2 + eps)
    t2 = be2 - rm2 * s2

    # Linear(hid -> n_classes), stored transposed [in, out]
    w2 = jax.random.normal(ks[10], (hid, n_classes), jnp.float32) / jnp.sqrt(hid)
    b2 = 0.01 * jax.random.normal(ks[11], (n_classes,), jnp.float32)

    # ---- Fold BN (eval) into the Linear layers ----
    w1f = s1[:, None] * w1
    b1f = b1 + t1 @ w1
    w2f = s2[:, None] * w2
    b2f = b2 + t2 @ w2

    # ---- Pad classifier to a lane-dense 128-wide output ----
    npad = _round_up(max(n_classes, LANES), LANES)
    w2p = jnp.zeros((hid, npad), jnp.float32).at[:, :n_classes].set(w2f)
    b2p = jnp.zeros((npad,), jnp.float32).at[:n_classes].set(b2f)

    kernel_params = {
        "w1": w1f.astype(jnp.bfloat16),
        "b1": b1f[None, :].astype(jnp.float32),
        "w2": w2p.astype(jnp.bfloat16),
        "b2": b2p[None, :].astype(jnp.float32),
    }
    ref_params = {
        "s1": s1[None, :], "t1": t1[None, :], "w1": w1, "b1": b1[None, :],
        "s2": s2[None, :], "t2": t2[None, :], "w2": w2, "b2": b2[None, :],
    }
    return kernel_params, ref_params


def reference_forward_matched(x, params, n_classes):
    """Same bf16 weights / f32 accumulation as the kernel (precision-matched)."""
    xb = x.astype(jnp.bfloat16)
    h = jnp.dot(xb, params["w1"], preferred_element_type=jnp.float32) + params["b1"]
    h = jnp.maximum(h, 0.0)
    logits = jnp.dot(h.astype(jnp.bfloat16), params["w2"],
                     preferred_element_type=jnp.float32) + params["b2"]
    return jax.nn.sigmoid(logits)[:, :n_classes]


def reference_forward_f32(x, rp):
    """Full-precision original-module semantics (eval mode)."""
    h = x * rp["s1"] + rp["t1"]
    h = jnp.maximum(h @ rp["w1"] + rp["b1"], 0.0)
    h = h * rp["s2"] + rp["t2"]
    return jax.nn.sigmoid(h @ rp["w2"] + rp["b2"])


if __name__ == "__main__":
    B = 50              # deliberately not a multiple of 8 (ragged last tile)
    BOW_LEN = 256       # args.bow_len
    N_CLASSES = 2       # args.num_classes (binary)

    key = jax.random.PRNGKey(0)
    kx, kp = jax.random.split(key)
    x = jax.random.normal(kx, (B, BOW_LEN), jnp.float32)
    params, ref_params = init_params(kp, BOW_LEN, N_CLASSES)

    out = jax.block_until_ready(news_model_forward(x, params, N_CLASSES))
    ref_bf16 = jax.block_until_ready(reference_forward_matched(x, params, N_CLASSES))
    ref_f32 = jax.block_until_ready(reference_forward_f32(x, ref_params))

    assert out.shape == (B, N_CLASSES)
    # Kernel matches a precision-matched (bf16 weights, f32 accum) reference.
    assert jnp.allclose(out, ref_bf16, atol=2e-3, rtol=2e-3)
    # And stays close to the full-f32 original-module semantics.
    assert jnp.allclose(out, ref_f32, atol=2e-2)
    print("KERNEL_OK")
</pallas_src>

<mosaic_0001>
module attributes {stable_mosaic.version = 11 : i64} {
  func.func @_news_kernel(%arg0: i32, %arg1: memref<56x256xf32, #tpu.memory_space<vmem>>, %arg2: memref<256x128xbf16, #tpu.memory_space<vmem>>, %arg3: memref<1x128xf32, #tpu.memory_space<vmem>>, %arg4: memref<128x128xbf16, #tpu.memory_space<vmem>>, %arg5: memref<1x128xf32, #tpu.memory_space<vmem>>, %arg6: memref<56x128xf32, #tpu.memory_space<vmem>>) attributes {dimension_semantics = [#tpu.dimension_semantics<parallel>], iteration_bounds = array<i64: 1>, scalar_prefetch = 0 : i64, scratch_operands = 0 : i64, tpu.core_type = #tpu.core_type<tc>, window_params = [{transform_indices = @transform_0, window_bounds = array<i64: 56, 256>}, {pipeline_mode = #tpu.pipeline_mode<synchronous>, transform_indices = @transform_1, window_bounds = array<i64: 256, 128>}, {pipeline_mode = #tpu.pipeline_mode<synchronous>, transform_indices = @transform_2, window_bounds = array<i64: 1, 128>}, {pipeline_mode = #tpu.pipeline_mode<synchronous>, transform_indices = @transform_3, window_bounds = array<i64: 128, 128>}, {pipeline_mode = #tpu.pipeline_mode<synchronous>, transform_indices = @transform_4, window_bounds = array<i64: 1, 128>}, {transform_indices = @transform_5, window_bounds = array<i64: 56, 128>}]} {
    %c0 = arith.constant 0 : index
    %c0_0 = arith.constant 0 : index
    %0 = vector.load %arg1[%c0, %c0_0] : memref<56x256xf32, #tpu.memory_space<vmem>>, vector<56x256xf32>
    %1 = arith.truncf %0 : vector<56x256xf32> to vector<56x256xbf16>
    %c0_1 = arith.constant 0 : index
    %c0_2 = arith.constant 0 : index
    %2 = vector.load %arg2[%c0_1, %c0_2] : memref<256x128xbf16, #tpu.memory_space<vmem>>, vector<256x128xbf16>
    %cst = arith.constant dense<0.000000e+00> : vector<56x128xf32>
    %3 = tpu.matmul %1, %2, %cst {dimension_numbers = #tpu.dot_dimension_numbers<[1], [0], [0], [1], [0, 0, 1, 1], [], []>} : vector<56x256xbf16>, vector<256x128xbf16>, vector<56x128xf32> -> vector<56x128xf32>
    %c0_3 = arith.constant 0 : index
    %c0_4 = arith.constant 0 : index
    %4 = vector.load %arg3[%c0_3, %c0_4] : memref<1x128xf32, #tpu.memory_space<vmem>>, vector<1x128xf32>
    %5 = vector.broadcast %4 : vector<1x128xf32> to vector<56x128xf32>
    %6 = arith.addf %3, %5 : vector<56x128xf32>
    %cst_5 = arith.constant 0.000000e+00 : f32
    %7 = vector.broadcast %cst_5 : f32 to vector<56x128xf32>
    %8 = arith.maximumf %6, %7 : vector<56x128xf32>
    %9 = arith.truncf %8 : vector<56x128xf32> to vector<56x128xbf16>
    %c0_6 = arith.constant 0 : index
    %c0_7 = arith.constant 0 : index
    %10 = vector.load %arg4[%c0_6, %c0_7] : memref<128x128xbf16, #tpu.memory_space<vmem>>, vector<128x128xbf16>
    %cst_8 = arith.constant dense<0.000000e+00> : vector<56x128xf32>
    %11 = tpu.matmul %9, %10, %cst_8 {dimension_numbers = #tpu.dot_dimension_numbers<[1], [0], [0], [1], [0, 0, 1, 1], [], []>} : vector<56x128xbf16>, vector<128x128xbf16>, vector<56x128xf32> -> vector<56x128xf32>
    %c0_9 = arith.constant 0 : index
    %c0_10 = arith.constant 0 : index
    %12 = vector.load %arg5[%c0_9, %c0_10] : memref<1x128xf32, #tpu.memory_space<vmem>>, vector<1x128xf32>
    %13 = vector.broadcast %12 : vector<1x128xf32> to vector<56x128xf32>
    %14 = arith.addf %11, %13 : vector<56x128xf32>
    %15 = arith.negf %14 : vector<56x128xf32>
    %16 = math.exp %15 : vector<56x128xf32>
    %cst_11 = arith.constant 1.000000e+00 : f32
    %17 = vector.broadcast %cst_11 : f32 to vector<56x128xf32>
    %18 = arith.addf %17, %16 : vector<56x128xf32>
    %19 = arith.divf %17, %18 : vector<56x128xf32>
    %c0_12 = arith.constant 0 : index
    %c0_13 = arith.constant 0 : index
    %20 = vector.load %arg6[%c0_12, %c0_13] : memref<56x128xf32, #tpu.memory_space<vmem>>, vector<56x128xf32>
    tpu.vector_store %arg6[%c0_12, %c0_13], %19 {strides = array<i32>} : memref<56x128xf32, #tpu.memory_space<vmem>>, vector<56x128xf32>,
    return
  }
  func.func @transform_0(%arg0: i32) -> (i32, i32) {
    %c0_i32 = arith.constant 0 : i32
    %c0_i32_0 = arith.constant 0 : i32
    return %arg0, %c0_i32 : i32, i32
  }
  func.func @transform_1(%arg0: i32) -> (i32, i32) {
    %c0_i32 = arith.constant 0 : i32
    %c0_i32_0 = arith.constant 0 : i32
    %c0_i32_1 = arith.constant 0 : i32
    return %c0_i32, %c0_i32_0 : i32, i32
  }
  func.func @transform_2(%arg0: i32) -> (i32, i32) {
    %c0_i32 = arith.constant 0 : i32
    %c0_i32_0 = arith.constant 0 : i32
    %c0_i32_1 = arith.constant 0 : i32
    return %c0_i32, %c0_i32_0 : i32, i32
  }
  func.func @transform_3(%arg0: i32) -> (i32, i32) {
    %c0_i32 = arith.constant 0 : i32
    %c0_i32_0 = arith.constant 0 : i32
    %c0_i32_1 = arith.constant 0 : i32
    return %c0_i32, %c0_i32_0 : i32, i32
  }
  func.func @transform_4(%arg0: i32) -> (i32, i32) {
    %c0_i32 = arith.constant 0 : i32
    %c0_i32_0 = arith.constant 0 : i32
    %c0_i32_1 = arith.constant 0 : i32
    return %c0_i32, %c0_i32_0 : i32, i32
  }
  func.func @transform_5(%arg0: i32) -> (i32, i32) {
    %c0_i32 = arith.constant 0 : i32
    %c0_i32_0 = arith.constant 0 : i32
    return %arg0, %c0_i32 : i32, i32
  }
}

</mosaic_0001>

<llo_original>
// kernel: tpu_custom_call.1
$region0: #{tpu_custom_call.1}
  #allocation0 [shape = 'u32[]', space=smem, size = 0x4, offset = 0x4, fixed_abs, tag = 'smem constant byte address 0x4 - core index']
  #allocation1 [shape = 'u32[144,128]{1,0:T(1,128)}', space=vmem, size = 0x12000, scoped, tag = 'internal scratch']
  %s0 = inlined_call_operand.hbm [shape: f32[50,256], index: 0, kind: input, shape index: {}]
  %s1 = inlined_call_operand.hbm [shape: bf16[256,128], index: 1, kind: input, shape index: {}]
  %s2 = inlined_call_operand.vmem [shape: f32[1,128], index: 2, kind: input, shape index: {}]
  %s3 = inlined_call_operand.hbm [shape: bf16[128,128], index: 3, kind: input, shape index: {}]
  %s4 = inlined_call_operand.vmem [shape: f32[1,128], index: 4, kind: input, shape index: {}]
  %s5 = inlined_call_operand.hbm [shape: f32[50,128], index: 5, kind: output, shape index: {}]
  %s6 = sld [smem:[#allocation0]]
  $region42: #{tpu_custom_call.1} parent=0
    _
  %s8 = ssub.s32 1, %s6
  %s9 = scalar_select 0, %s8, %s6
  $region1: #{tpu_custom_call.1} parent=0
    #allocation2 [shape = 'u8[57344]{0}', space=vmem, size = 0xe000, scoped, tag = 'input window, operand 0, single buffered']
    #allocation3 [shape = 's32[1]{0}', space=sflag, size = 0x4, scoped, tag = 'scoped memory for tpu_custom_call.1']
    #allocation4 [shape = 's32[1]{0}', space=sflag, size = 0x4, scoped, tag = 'scoped memory for tpu_custom_call.1']
    #allocation5 [shape = 'u8[65536]{0}', space=vmem, size = 0x10000, scoped, tag = 'input window, operand 1, single buffered']
    #allocation6 [shape = 's32[1]{0}', space=sflag, size = 0x4, scoped, tag = 'scoped memory for tpu_custom_call.1']
    #allocation7 [shape = 'u8[32768]{0}', space=vmem, size = 0x8000, scoped, tag = 'input window, operand 3, single buffered']
    #allocation8 [shape = 'u8[28672]{0}', space=vmem, size = 0x7000, scoped, tag = 'output window, operand 0, single buffered']
    %10 = vsyncpa [#allocation3], 0
    %11 = vsyncpa [#allocation6], 0
    %12 = vsyncpa [#allocation4], 0
    // Predicated region
    $region2: #{tpu_custom_call.1} parent=1 // pred_check
      _
    $region3: #{tpu_custom_call.1} parent=1 // pred_check_branch
      %14 = sbr.rel (0) target = $region5
    $region4: #{tpu_custom_call.1} parent=1 // pred_region
      %s16 = ssub.s32 1792, 1792
      %17 = vsyncadd [#allocation3], %s16
      %s18 = sshll.u32 [#allocation2], 4
      %s19 = int_to_ptr.vmem [resolvable:$true] %s18
      %24 = dma.hbm_to_vmem [thread:$0]  %s0, 1792, %s19, [#allocation3], 256, 256, 16
    $region5: #{tpu_custom_call.1} parent=1 // pred_fallthru
      _
    // Predicated region
    $region6: #{tpu_custom_call.1} parent=1 // pred_check
      _
    $region7: #{tpu_custom_call.1} parent=1 // pred_check_branch
      %26 = sbr.rel (0) target = $region9
    $region8: #{tpu_custom_call.1} parent=1 // pred_region
      %s28 = ssub.s32 2048, 2048
      %29 = vsyncadd [#allocation6], %s28
      %s30 = sshll.u32 [#allocation5], 4
      %s31 = int_to_ptr.vmem [resolvable:$true] %s30
      %36 = dma.hbm_to_vmem [thread:$0]  %s1, 2048, %s31, [#allocation6], 64, 64, 4
    $region9: #{tpu_custom_call.1} parent=1 // pred_fallthru
      _
    // Predicated region
    $region10: #{tpu_custom_call.1} parent=1 // pred_check
      _
    $region11: #{tpu_custom_call.1} parent=1 // pred_check_branch
      %38 = sbr.rel (0) target = $region13
    $region12: #{tpu_custom_call.1} parent=1 // pred_region
      _
    $region13: #{tpu_custom_call.1} parent=1 // pred_fallthru
      _
    // Predicated region
    $region14: #{tpu_custom_call.1} parent=1 // pred_check
      _
    $region15: #{tpu_custom_call.1} parent=1 // pred_check_branch
      %40 = sbr.rel (0) target = $region17
    $region16: #{tpu_custom_call.1} parent=1 // pred_region
      %s42 = ssub.s32 1024, 1024
      %43 = vsyncadd [#allocation6], %s42
      %s44 = sshll.u32 [#allocation7], 4
      %s45 = int_to_ptr.vmem [resolvable:$true] %s44
      %50 = dma.hbm_to_vmem [thread:$0]  %s3, 1024, %s45, [#allocation6], 64, 64, 4
    $region17: #{tpu_custom_call.1} parent=1 // pred_fallthru
      _
    // Predicated region
    $region18: #{tpu_custom_call.1} parent=1 // pred_check
      _
    $region19: #{tpu_custom_call.1} parent=1 // pred_check_branch
      %52 = sbr.rel (0) target = $region21
    $region20: #{tpu_custom_call.1} parent=1 // pred_region
      _
    $region21: #{tpu_custom_call.1} parent=1 // pred_fallthru
      _
    // Predicated region
    $region22: #{tpu_custom_call.1} parent=1 // pred_check
      _
    $region23: #{tpu_custom_call.1} parent=1 // pred_check_branch
      %54 = sbr.rel (0) target = $region25
    $region24: #{tpu_custom_call.1} parent=1 // pred_region
      %55 = dma.done [#allocation3], 1792
    $region25: #{tpu_custom_call.1} parent=1 // pred_fallthru
      _
    // Predicated region
    $region26: #{tpu_custom_call.1} parent=1 // pred_check
      _
    $region27: #{tpu_custom_call.1} parent=1 // pred_check_branch
      %57 = sbr.rel (0) target = $region29
    $region28: #{tpu_custom_call.1} parent=1 // pred_region
      %58 = dma.done [#allocation6], 2048
    $region29: #{tpu_custom_call.1} parent=1 // pred_fallthru
      _
    // Predicated region
    $region30: #{tpu_custom_call.1} parent=1 // pred_check
      _
    $region31: #{tpu_custom_call.1} parent=1 // pred_check_branch
      %60 = sbr.rel (0) target = $region33
    $region32: #{tpu_custom_call.1} parent=1 // pred_region
      %61 = dma.done [#allocation6], 1024
    $region33: #{tpu_custom_call.1} parent=1 // pred_fallthru
      _
    %v63 = vld [vmem:[#allocation2] sm:$0xff]
    %v64 = vld [vmem:[#allocation2 + $0x8] sm:$0xff]
    %v65 = vld [vmem:[#allocation2 + $0x10] sm:$0xff]
    %v66 = vld [vmem:[#allocation2 + $0x18] sm:$0xff]
    %v67 = vld [vmem:[#allocation2 + $0x20] sm:$0xff]
    %v68 = vld [vmem:[#allocation2 + $0x28] sm:$0xff]
    %v69 = vld [vmem:[#allocation2 + $0x30] sm:$0xff]
    %v70 = vld [vmem:[#allocation2 + $0x38] sm:$0xff]
    %v71 = vld [vmem:[#allocation2 + $0x40] sm:$0xff]
    %v72 = vld [vmem:[#allocation2 + $0x48] sm:$0xff]
    %v73 = vld [vmem:[#allocation2 + $0x50] sm:$0xff]
    %v74 = vld [vmem:[#allocation2 + $0x58] sm:$0xff]
    %v75 = vld [vmem:[#allocation2 + $0x60] sm:$0xff]
    %v76 = vld [vmem:[#allocation2 + $0x68] sm:$0xff]
    %v77 = vpack.c.bf16 %v65, %v63
    %v78 = vpack.c.bf16 %v66, %v64
    %v79 = vpack.c.bf16 %v69, %v67
    %v80 = vpack.c.bf16 %v70, %v68
    %v81 = vpack.c.bf16 %v73, %v71
    %v82 = vpack.c.bf16 %v74, %v72
    %v83 = vpack.c.bf16 %v75, %v75
    %v84 = vpack.c.bf16 %v76, %v76
    %v85 = vld [vmem:[#allocation5] sm:$0xf]
    %v86 = vld [vmem:[#allocation5 + $0x4] sm:$0xf]
    %v87 = vld [vmem:[#allocation5 + $0x8] sm:$0xf]
    %v88 = vld [vmem:[#allocation5 + $0xc] sm:$0xf]
    %v89 = vld [vmem:[#allocation5 + $0x10] sm:$0xf]
    %v90 = vld [vmem:[#allocation5 + $0x14] sm:$0xf]
    %v91 = vld [vmem:[#allocation5 + $0x18] sm:$0xf]
    %v92 = vld [vmem:[#allocation5 + $0x1c] sm:$0xf]
    %v93 = vld [vmem:[#allocation5 + $0x20] sm:$0xf]
    %v94 = vld [vmem:[#allocation5 + $0x24] sm:$0xf]
    %v95 = vld [vmem:[#allocation5 + $0x28] sm:$0xf]
    %v96 = vld [vmem:[#allocation5 + $0x2c] sm:$0xf]
    %v97 = vld [vmem:[#allocation5 + $0x30] sm:$0xf]
    %v98 = vld [vmem:[#allocation5 + $0x34] sm:$0xf]
    %v99 = vld [vmem:[#allocation5 + $0x38] sm:$0xf]
    %v100 = vld [vmem:[#allocation5 + $0x3c] sm:$0xf]
    %v101 = vld [vmem:[#allocation5 + $0x40] sm:$0xf]
    %v102 = vld [vmem:[#allocation5 + $0x44] sm:$0xf]
    %v103 = vld [vmem:[#allocation5 + $0x48] sm:$0xf]
    %v104 = vld [vmem:[#allocation5 + $0x4c] sm:$0xf]
    %v105 = vld [vmem:[#allocation5 + $0x50] sm:$0xf]
    %v106 = vld [vmem:[#allocation5 + $0x54] sm:$0xf]
    %v107 = vld [vmem:[#allocation5 + $0x58] sm:$0xf]
    %v108 = vld [vmem:[#allocation5 + $0x5c] sm:$0xf]
    %v109 = vld [vmem:[#allocation5 + $0x60] sm:$0xf]
    %v110 = vld [vmem:[#allocation5 + $0x64] sm:$0xf]
    %v111 = vld [vmem:[#allocation5 + $0x68] sm:$0xf]
    %v112 = vld [vmem:[#allocation5 + $0x6c] sm:$0xf]
    %v113 = vld [vmem:[#allocation5 + $0x70] sm:$0xf]
    %v114 = vld [vmem:[#allocation5 + $0x74] sm:$0xf]
    %v115 = vld [vmem:[#allocation5 + $0x78] sm:$0xf]
    %v116 = vld [vmem:[#allocation5 + $0x7c] sm:$0xf]
    %v117 = vld [vmem:[%s2] sm:$0x1]
    %v119 = vlaneseq
    %v120 = vshrl.u32 %v119, 7
    %v121 = vsub.s32 0, %v120
    %v122 = vrot.slane %v117, %v121
    %v156 = vunpack.c.l.b16 %v85
    %v157 = vunpack.c.l.b16 %v86
    %v158 = vunpack.c.l.b16 %v87
    %v159 = vunpack.c.l.b16 %v88
    %v160 = vunpack.c.l.b16 %v89
    %v161 = vunpack.c.l.b16 %v90
    %v162 = vunpack.c.l.b16 %v91
    %v163 = vunpack.c.l.b16 %v92
    %v164 = vunpack.c.l.b16 %v93
    %v165 = vunpack.c.l.b16 %v94
    %v166 = vunpack.c.l.b16 %v95
    %v167 = vunpack.c.l.b16 %v96
    %v168 = vunpack.c.l.b16 %v97
    %v169 = vunpack.c.l.b16 %v98
    %v170 = vunpack.c.l.b16 %v99
    %v171 = vunpack.c.l.b16 %v100
    %v172 = vunpack.c.l.b16 %v101
    %v173 = vunpack.c.l.b16 %v102
    %v174 = vunpack.c.l.b16 %v103
    %v175 = vunpack.c.l.b16 %v104
    %v176 = vunpack.c.l.b16 %v105
    %v177 = vunpack.c.l.b16 %v106
    %v178 = vunpack.c.l.b16 %v107
    %v179 = vunpack.c.l.b16 %v108
    %v180 = vunpack.c.l.b16 %v109
    %v181 = vunpack.c.l.b16 %v110
    %v182 = vunpack.c.l.b16 %v111
    %v183 = vunpack.c.l.b16 %v112
    %v184 = vunpack.c.l.b16 %v113
    %v185 = vunpack.c.l.b16 %v114
    %v186 = vunpack.c.l.b16 %v115
    %v187 = vunpack.c.l.b16 %v116
    %v188 = vpack.c.b16 %v157, %v156
    %v189 = vpack.c.b16 %v159, %v158
    %v190 = vpack.c.b16 %v161, %v160
    %v191 = vpack.c.b16 %v163, %v162
    %v192 = vpack.c.b16 %v165, %v164
    %v193 = vpack.c.b16 %v167, %v166
    %v194 = vpack.c.b16 %v169, %v168
    %v195 = vpack.c.b16 %v171, %v170
    %v196 = vpack.c.b16 %v173, %v172
    %v197 = vpack.c.b16 %v175, %v174
    %v198 = vpack.c.b16 %v177, %v176
    %v199 = vpack.c.b16 %v179, %v178
    %v200 = vpack.c.b16 %v181, %v180
    %v201 = vpack.c.b16 %v183, %v182
    %v202 = vpack.c.b16 %v185, %v184
    %v203 = vpack.c.b16 %v187, %v186
    %220 = vmatprep.subr.bf16.mxu0 0
    %221 = vmatpush1.bf16.msra.mxu0 %v195
    %222 = vmatprep.subr.bf16.mxu0 0
    %223 = vmatpush1.bf16.msra.mxu0 %v194
    %224 = vmatprep.subr.bf16.mxu0 0
    %225 = vmatpush1.bf16.msra.mxu0 %v193
    %226 = vmatprep.subr.bf16.mxu0 0
    %227 = vmatpush1.bf16.msra.mxu0 %v192
    %228 = vmatprep.subr.bf16.mxu0 0
    %229 = vmatpush1.bf16.msra.mxu0 %v191
    %230 = vmatprep.subr.bf16.mxu0 0
    %231 = vmatpush1.bf16.msra.mxu0 %v190
    %232 = vmatprep.subr.bf16.mxu0 0
    %233 = vmatpush1.bf16.msra.mxu0 %v189
    %234 = vmatprep.subr.bf16.mxu0 0
    %235 = vmatpush1.bf16.msra.mxu0 %v188
    %236 = vmatprep.subr.bf16.mxu0 0
    %237 = vmatpush2.bf16.msra.mxu0 %v203
    %238 = vmatprep.subr.bf16.mxu0 0
    %239 = vmatpush2.bf16.msra.mxu0 %v202
    %240 = vmatprep.subr.bf16.mxu0 0
    %241 = vmatpush2.bf16.msra.mxu0 %v201
    %242 = vmatprep.subr.bf16.mxu0 0
    %243 = vmatpush2.bf16.msra.mxu0 %v200
    %244 = vmatprep.subr.bf16.mxu0 0
    %245 = vmatpush2.bf16.msra.mxu0 %v199
    %246 = vmatprep.subr.bf16.mxu0 0
    %247 = vmatpush2.bf16.msra.mxu0 %v198
    %248 = vmatprep.subr.bf16.mxu0 0
    %249 = vmatpush2.bf16.msra.mxu0 %v197
    %250 = vmatprep.subr.bf16.mxu0 0
    %251 = vmatpush2.bf16.msra.mxu0 %v196
    %252 = vmatprep.mubr.bf16.mxu0 %v78
    %253 = vmatmul.mubr.bf16.gmra.mxu0 %v77
    %v254 = vpop.f32.mrf.mxu0
    %v255 = vadd.f32 %v122, %v254
    %v256 = vpop.f32.mrf.mxu0
    %v257 = vpop.f32.mrf.mxu0
    %v258 = vadd.f32 %v122, %v257
    %v259 = vpop.f32.mrf.mxu0
    %260 = vmatprep.mubr.bf16.mxu0 %v80
    %261 = vmatmul.mubr.bf16.gmra.mxu0 %v79
    %v262 = vpop.f32.mrf.mxu0
    %v263 = vadd.f32 %v122, %v262
    %v264 = vpop.f32.mrf.mxu0
    %v265 = vpop.f32.mrf.mxu0
    %v266 = vadd.f32 %v122, %v265
    %v267 = vpop.f32.mrf.mxu0
    %268 = vmatprep.mubr.bf16.mxu0 %v82
    %269 = vmatmul.mubr.bf16.gmra.mxu0 %v81
    %v270 = vpop.f32.mrf.mxu0
    %v271 = vadd.f32 %v122, %v270
    %v272 = vpop.f32.mrf.mxu0
    %v273 = vpop.f32.mrf.mxu0
    %v274 = vadd.f32 %v122, %v273
    %v275 = vpop.f32.mrf.mxu0
    %276 = vmatprep.mubr.bf16.mxu0 %v84
    %277 = vmatmul.mubr.bf16.gmra.mxu0 %v83
    %v278 = vpop.f32.mrf.mxu0
    %v279 = vadd.f32 %v122, %v278
    %v280 = vpop.f32.mrf.mxu0
    %v281 = vpop.f32.mrf.mxu0
    %v282 = vpop.f32.mrf.mxu0
    %283 = vdwg.mxu0
    %v284 = vmax.f32 %v255, 0.0
    %v285 = vmax.f32 %v258, 0.0
    %v286 = vmax.f32 %v263, 0.0
    %v287 = vmax.f32 %v266, 0.0
    %v288 = vmax.f32 %v271, 0.0
    %v289 = vmax.f32 %v274, 0.0
    %v290 = vmax.f32 %v279, 0.0
    %v291 = vpack.c.bf16 %v285, %v284
    %v292 = vpack.c.bf16 %v287, %v286
    %v293 = vpack.c.bf16 %v289, %v288
    %v294 = vpack.c.bf16 %v290, %v290
    %v295 = vld [vmem:[#allocation7] sm:$0xf]
    %v296 = vld [vmem:[#allocation7 + $0x4] sm:$0xf]
    %v297 = vld [vmem:[#allocation7 + $0x8] sm:$0xf]
    %v298 = vld [vmem:[#allocation7 + $0xc] sm:$0xf]
    %v299 = vld [vmem:[#allocation7 + $0x10] sm:$0xf]
    %v300 = vld [vmem:[#allocation7 + $0x14] sm:$0xf]
    %v301 = vld [vmem:[#allocation7 + $0x18] sm:$0xf]
    %v302 = vld [vmem:[#allocation7 + $0x1c] sm:$0xf]
    %v303 = vld [vmem:[#allocation7 + $0x20] sm:$0xf]
    %v304 = vld [vmem:[#allocation7 + $0x24] sm:$0xf]
    %v305 = vld [vmem:[#allocation7 + $0x28] sm:$0xf]
    %v306 = vld [vmem:[#allocation7 + $0x2c] sm:$0xf]
    %v307 = vld [vmem:[#allocation7 + $0x30] sm:$0xf]
    %v308 = vld [vmem:[#allocation7 + $0x34] sm:$0xf]
    %v309 = vld [vmem:[#allocation7 + $0x38] sm:$0xf]
    %v310 = vld [vmem:[#allocation7 + $0x3c] sm:$0xf]
    %v311 = vld [vmem:[%s4] sm:$0x1]
    %v313 = vlaneseq
    %v314 = vshrl.u32 %v313, 7
    %v315 = vsub.s32 0, %v314
    %v316 = vrot.slane %v311, %v315
    %v334 = vunpack.c.l.b16 %v295
    %v335 = vunpack.c.l.b16 %v296
    %v336 = vunpack.c.l.b16 %v297
    %v337 = vunpack.c.l.b16 %v298
    %v338 = vunpack.c.l.b16 %v299
    %v339 = vunpack.c.l.b16 %v300
    %v340 = vunpack.c.l.b16 %v301
    %v341 = vunpack.c.l.b16 %v302
    %v342 = vunpack.c.l.b16 %v303
    %v343 = vunpack.c.l.b16 %v304
    %v344 = vunpack.c.l.b16 %v305
    %v345 = vunpack.c.l.b16 %v306
    %v346 = vunpack.c.l.b16 %v307
    %v347 = vunpack.c.l.b16 %v308
    %v348 = vunpack.c.l.b16 %v309
    %v349 = vunpack.c.l.b16 %v310
    %v350 = vpack.c.b16 %v335, %v334
    %v351 = vpack.c.b16 %v337, %v336
    %v352 = vpack.c.b16 %v339, %v338
    %v353 = vpack.c.b16 %v341, %v340
    %v354 = vpack.c.b16 %v343, %v342
    %v355 = vpack.c.b16 %v345, %v344
    %v356 = vpack.c.b16 %v347, %v346
    %v357 = vpack.c.b16 %v349, %v348
    %366 = vmatprep.subr.bf16.mxu0 0
    %367 = vmatpush1.bf16.msra.mxu0 %v357
    %368 = vmatprep.subr.bf16.mxu0 0
    %369 = vmatpush1.bf16.msra.mxu0 %v356
    %370 = vmatprep.subr.bf16.mxu0 0
    %371 = vmatpush1.bf16.msra.mxu0 %v355
    %372 = vmatprep.subr.bf16.mxu0 0
    %373 = vmatpush1.bf16.msra.mxu0 %v354
    %374 = vmatprep.subr.bf16.mxu0 0
    %375 = vmatpush1.bf16.msra.mxu0 %v353
    %376 = vmatprep.subr.bf16.mxu0 0
    %377 = vmatpush1.bf16.msra.mxu0 %v352
    %378 = vmatprep.subr.bf16.mxu0 0
    %379 = vmatpush1.bf16.msra.mxu0 %v351
    %380 = vmatprep.subr.bf16.mxu0 0
    %381 = vmatpush1.bf16.msra.mxu0 %v350
    %382 = vmatprep.subr.bf16.mxu0 0
    %383 = vmatpush2.bf16.msra.mxu0 0
    %384 = vmatprep.subr.bf16.mxu0 0
    %385 = vmatpush2.bf16.msra.mxu0 0
    %386 = vmatprep.subr.bf16.mxu0 0
    %387 = vmatpush2.bf16.msra.mxu0 0
    %388 = vmatprep.subr.bf16.mxu0 0
    %389 = vmatpush2.bf16.msra.mxu0 0
    %390 = vmatprep.subr.bf16.mxu0 0
    %391 = vmatpush2.bf16.msra.mxu0 0
    %392 = vmatprep.subr.bf16.mxu0 0
    %393 = vmatpush2.bf16.msra.mxu0 0
    %394 = vmatprep.subr.bf16.mxu0 0
    %395 = vmatpush2.bf16.msra.mxu0 0
    %396 = vmatprep.subr.bf16.mxu0 0
    %397 = vmatpush2.bf16.msra.mxu0 0
    %398 = vmatprep.mubr.bf16.mxu0 0
    %399 = vmatmul.mubr.bf16.gmra.mxu0 %v291
    %v400 = vpop.f32.mrf.mxu0
    %v401 = vadd.f32 %v316, %v400
    %v402 = vpop.f32.mrf.mxu0
    %v403 = vpop.f32.mrf.mxu0
    %v404 = vadd.f32 %v316, %v403
    %v405 = vpop.f32.mrf.mxu0
    %406 = vmatprep.mubr.bf16.mxu0 0
    %407 = vmatmul.mubr.bf16.gmra.mxu0 %v292
    %v408 = vpop.f32.mrf.mxu0
    %v409 = vadd.f32 %v316, %v408
    %v410 = vpop.f32.mrf.mxu0
    %v411 = vpop.f32.mrf.mxu0
    %v412 = vadd.f32 %v316, %v411
    %v413 = vpop.f32.mrf.mxu0
    %414 = vmatprep.mubr.bf16.mxu0 0
    %415 = vmatmul.mubr.bf16.gmra.mxu0 %v293
    %v416 = vpop.f32.mrf.mxu0
    %v417 = vadd.f32 %v316, %v416
    %v418 = vpop.f32.mrf.mxu0
    %v419 = vpop.f32.mrf.mxu0
    %v420 = vadd.f32 %v316, %v419
    %v421 = vpop.f32.mrf.mxu0
    %422 = vmatprep.mubr.bf16.mxu0 0
    %423 = vmatmul.mubr.bf16.gmra.mxu0 %v294
    %v424 = vpop.f32.mrf.mxu0
    %v425 = vadd.f32 %v316, %v424
    %v426 = vpop.f32.mrf.mxu0
    %v427 = vpop.f32.mrf.mxu0
    %v428 = vpop.f32.mrf.mxu0
    %429 = vdwg.mxu0
    %v430 = vxor.u32 %v401, 2147483648
    %v431 = vxor.u32 %v404, 2147483648
    %v432 = vxor.u32 %v409, 2147483648
    %v433 = vxor.u32 %v412, 2147483648
    %v434 = vxor.u32 %v417, 2147483648
    %v435 = vxor.u32 %v420, 2147483648
    %v436 = vxor.u32 %v425, 2147483648
    %v437 = vmul.f32 %v430, 1.442695
    %v438 = vpow.pop %v437
    %v439 = vmul.f32 %v431, 1.442695
    %v440 = vpow.pop %v439
    %v441 = vmul.f32 %v432, 1.442695
    %v442 = vpow.pop %v441
    %v443 = vmul.f32 %v433, 1.442695
    %v444 = vpow.pop %v443
    %v445 = vmul.f32 %v434, 1.442695
    %v446 = vpow.pop %v445
    %v447 = vmul.f32 %v435, 1.442695
    %v448 = vpow.pop %v447
    %v449 = vmul.f32 %v436, 1.442695
    %v450 = vpow.pop %v449
    %v451 = vadd.f32 %v438, 1.0
    %v452 = vadd.f32 %v440, 1.0
    %v453 = vadd.f32 %v442, 1.0
    %v454 = vadd.f32 %v444, 1.0
    %v455 = vadd.f32 %v446, 1.0
    %v456 = vadd.f32 %v448, 1.0
    %v457 = vadd.f32 %v450, 1.0
    %v458 = vrcp.pop %v451
    %v459 = vmul.f32 1.0, %v458
    %v460 = vrcp.pop %v452
    %v461 = vmul.f32 1.0, %v460
    %v462 = vrcp.pop %v453
    %v463 = vmul.f32 1.0, %v462
    %v464 = vrcp.pop %v454
    %v465 = vmul.f32 1.0, %v464
    %v466 = vrcp.pop %v455
    %v467 = vmul.f32 1.0, %v466
    %v468 = vrcp.pop %v456
    %v469 = vmul.f32 1.0, %v468
    %v470 = vrcp.pop %v457
    %v471 = vmul.f32 1.0, %v470
    %472 = vst [vmem:[#allocation8] sm:$0xff] %v459
    %473 = vst [vmem:[#allocation8 + $0x8] sm:$0xff] %v461
    %474 = vst [vmem:[#allocation8 + $0x10] sm:$0xff] %v463
    %475 = vst [vmem:[#allocation8 + $0x18] sm:$0xff] %v465
    %476 = vst [vmem:[#allocation8 + $0x20] sm:$0xff] %v467
    %477 = vst [vmem:[#allocation8 + $0x28] sm:$0xff] %v469
    %478 = vst [vmem:[#allocation8 + $0x30] sm:$0xff] %v471
    // Predicated region
    $region34: #{tpu_custom_call.1} parent=1 // pred_check
      _
    $region35: #{tpu_custom_call.1} parent=1 // pred_check_branch
      %480 = sbr.rel (0) target = $region37
    $region36: #{tpu_custom_call.1} parent=1 // pred_region
      %s482 = ssub.s32 896, 896
      %483 = vsyncadd [#allocation4], %s482
      %s484 = sshll.u32 [#allocation8], 4
      %s485 = int_to_ptr.vmem [resolvable:$true] %s484
      %490 = dma.vmem_to_hbm [thread:$0]  %s485, 896, %s5, [#allocation4], 128, 128, 8
    $region37: #{tpu_custom_call.1} parent=1 // pred_fallthru
      _
    // Predicated region
    $region38: #{tpu_custom_call.1} parent=1 // pred_check
      _
    $region39: #{tpu_custom_call.1} parent=1 // pred_check_branch
      %492 = sbr.rel (0) target = $region41
    $region40: #{tpu_custom_call.1} parent=1 // pred_region
      %493 = dma.done [#allocation4], 896
    $region41: #{tpu_custom_call.1} parent=1 // pred_fallthru
      _
    %494 = vsyncpa [#allocation3], 1
    %495 = vsyncpa [#allocation6], 1
    %496 = vsyncpa [#allocation4], 1

</llo_original>
